<compile_context>
chip_gen: v7x
topology: tpu7x:2x2x1
jax: 0.10.0
libtpu: 0.0.40
codegen_flags: <defaults>
</compile_context>

<pallas_src>
import functools

import jax
import jax.numpy as jnp
from jax import lax
from jax.experimental import pallas as pl
from jax.experimental.pallas import tpu as pltpu

_VMEM_LIMIT = 64 * 1024 * 1024  # explicit budget; safe on v5e/v6e (128 MiB) and v7x (64 MiB)


def _round_up(x, m):
    return (x + m - 1) // m * m


def _pick_batch_tile(b_pad):
    """Largest multiple-of-8 divisor of b_pad that is <= 128 (batch grid tile)."""
    bt = min(b_pad, 128)
    while b_pad % bt:
        bt -= 8
    return bt


# ---------------------------------------------------------------------------
# Generic Y = X @ W + b kernel (used for the hoisted input projection and the FC).
# ---------------------------------------------------------------------------
def _proj_kernel(x_ref, w_ref, b_ref, o_ref):
    o_ref[...] = (jnp.dot(x_ref[...], w_ref[...],
                          preferred_element_type=jnp.float32) + b_ref[...])


def _matmul_bias(x, w, b, row_tile):
    """x: (R, K), w: (K, N), b: (1, N) -> (R, N).  R % row_tile == 0."""
    R, K = x.shape
    N = w.shape[1]
    return pl.pallas_call(
        _proj_kernel,
        out_shape=jax.ShapeDtypeStruct((R, N), jnp.float32),
        grid_spec=pltpu.PrefetchScalarGridSpec(
            num_scalar_prefetch=0,
            grid=(R // row_tile,),
            in_specs=[pl.BlockSpec((row_tile, K), lambda i: (i, 0)),
                      pl.BlockSpec((K, N), lambda i: (0, 0)),
                      pl.BlockSpec((1, N), lambda i: (0, 0))],
            out_specs=pl.BlockSpec((row_tile, N), lambda i: (i, 0)),
        ),
        compiler_params=pltpu.CompilerParams(
            dimension_semantics=("parallel",),
            vmem_limit_bytes=_VMEM_LIMIT),
    )(x, w, b)


# ---------------------------------------------------------------------------
# LSTM layer recurrence: gates were pre-computed for the x path; only h @ W_hh
# remains per step.  Gate column layout is (i | f | o | g), each hp lanes wide.
# ---------------------------------------------------------------------------
def _lstm_layer_kernel(hp, xproj_ref, whh_ref, seq_ref, h_ref, c_ref):
    t = pl.program_id(1)

    @pl.when(t == 0)
    def _():
        h_ref[...] = jnp.zeros_like(h_ref)
        c_ref[...] = jnp.zeros_like(c_ref)

    gates = xproj_ref[...] + jnp.dot(h_ref[...], whh_ref[...],
                                     preferred_element_type=jnp.float32)
    sig = jax.nn.sigmoid(gates[:, :3 * hp])        # one contiguous (B, 3Hp) slab: i|f|o
    g_g = jnp.tanh(gates[:, 3 * hp:])              # one contiguous (B, Hp) slab
    i_g = sig[:, :hp]
    f_g = sig[:, hp:2 * hp]
    o_g = sig[:, 2 * hp:]

    c_new = f_g * c_ref[...] + i_g * g_g
    h_new = o_g * jnp.tanh(c_new)
    c_ref[...] = c_new
    h_ref[...] = h_new
    seq_ref[...] = h_new


def _lstm_layer(x_proj, w_hh, T, b_pad, b_tile, hp):
    nb = b_pad // b_tile
    idx = lambda b, t: (t * nb + b, 0)
    return pl.pallas_call(
        functools.partial(_lstm_layer_kernel, hp),
        out_shape=jax.ShapeDtypeStruct((T * b_pad, hp), jnp.float32),
        grid_spec=pltpu.PrefetchScalarGridSpec(
            num_scalar_prefetch=0,
            grid=(nb, T),
            in_specs=[pl.BlockSpec((b_tile, 4 * hp), idx),
                      pl.BlockSpec((hp, 4 * hp), lambda b, t: (0, 0))],
            out_specs=pl.BlockSpec((b_tile, hp), idx),
            scratch_shapes=[pltpu.VMEM((b_tile, hp), jnp.float32),   # h
                            pltpu.VMEM((b_tile, hp), jnp.float32)],  # c
        ),
        compiler_params=pltpu.CompilerParams(
            dimension_semantics=("parallel", "arbitrary"),
            vmem_limit_bytes=_VMEM_LIMIT),
    )(x_proj, w_hh)


# ---------------------------------------------------------------------------
# Weight packing: torch layout -> padded, (i,f,o,g)-reordered, right-mult layout.
# ---------------------------------------------------------------------------
def _pack_gate_matrix(w, rows_out, H, hp):
    """w: (4H, in_dim) torch rows (i,f,g,o) -> (rows_out, 4*hp), cols (i|f|o|g)."""
    in_dim = w.shape[1]
    i_w, f_w, g_w, o_w = w[:H], w[H:2 * H], w[2 * H:3 * H], w[3 * H:4 * H]
    out = jnp.zeros((rows_out, 4 * hp), jnp.float32)
    for k, blk in enumerate((i_w, f_w, o_w, g_w)):
        out = out.at[:in_dim, k * hp:k * hp + H].set(blk.T)
    return out


def _pack_gate_bias(b_ih, b_hh, H, hp):
    b = b_ih + b_hh
    i_b, f_b, g_b, o_b = b[:H], b[H:2 * H], b[2 * H:3 * H], b[3 * H:4 * H]
    out = jnp.zeros((1, 4 * hp), jnp.float32)
    for k, blk in enumerate((i_b, f_b, o_b, g_b)):
        out = out.at[0, k * hp:k * hp + H].set(blk)
    return out


# ---------------------------------------------------------------------------
# Forward pass.
# ---------------------------------------------------------------------------
def stock_lstm_forward(x, params):
    """x: (B, T, input_size) float32 -> (B, output_size) float32."""
    B, T, I = x.shape
    H = params["hidden_size"]
    L = params["num_layers"]
    O = params["output_size"]

    b_pad = max(8, _round_up(B, 8))
    hp = _round_up(H, 128)
    o_pad = _round_up(O, 128)
    b_tile = _pick_batch_tile(b_pad)

    # time-major, batch-padded, flattened to (T*b_pad, I)
    x_tm = jnp.transpose(x, (1, 0, 2)).astype(jnp.float32)       # (T, B, I)
    x_tm = jnp.pad(x_tm, ((0, 0), (0, b_pad - B), (0, 0)))        # (T, b_pad, I)
    seq = x_tm.reshape(T * b_pad, I)

    # Row tile for the hoisted input projection: a multiple of b_pad that divides
    # T*b_pad, targeting ~512 rows per grid step.
    tchunk = max(1, min(T, 512 // b_pad))
    while T % tchunk:
        tchunk -= 1
    row_tile = tchunk * b_pad

    for l in range(L):
        in_dim = I if l == 0 else H
        rows_out = in_dim if l == 0 else hp
        w_ih_p = _pack_gate_matrix(params[f"w_ih_{l}"], rows_out, H, hp)
        w_hh_p = _pack_gate_matrix(params[f"w_hh_{l}"], hp, H, hp)
        b_p = _pack_gate_bias(params[f"b_ih_{l}"], params[f"b_hh_{l}"], H, hp)

        # Hoisted input projection: one big matmul over all timesteps.
        x_proj = _matmul_bias(seq, w_ih_p, b_p, row_tile)         # (T*b_pad, 4hp)
        # Serial recurrence (only h @ W_hh inside the time loop).
        seq = _lstm_layer(x_proj, w_hh_p, T, b_pad, b_tile, hp)   # (T*b_pad, hp)

    # Final Linear on the last timestep (lane-dense padded output, sliced below).
    w_fc_p = jnp.zeros((hp, o_pad), jnp.float32).at[:H, :O].set(params["w_fc"].T)
    b_fc_p = jnp.zeros((1, o_pad), jnp.float32).at[0, :O].set(params["b_fc"])
    h_last = seq[(T - 1) * b_pad:, :]                             # (b_pad, hp)
    out_p = _matmul_bias(h_last, w_fc_p, b_fc_p, b_pad)           # (b_pad, o_pad)
    return out_p[:B, :O]


# ---------------------------------------------------------------------------
# Params (torch.nn.LSTM / nn.Linear shapes) and pure-JAX reference.
# ---------------------------------------------------------------------------
def init_params(key, input_size, hidden_size, num_layers, output_size):
    params = {"input_size": input_size, "hidden_size": hidden_size,
              "num_layers": num_layers, "output_size": output_size}
    bound = 1.0 / (hidden_size ** 0.5)
    keys = jax.random.split(key, 4 * num_layers + 2)
    idx = 0
    for l in range(num_layers):
        in_dim = input_size if l == 0 else hidden_size
        params[f"w_ih_{l}"] = jax.random.uniform(
            keys[idx], (4 * hidden_size, in_dim), jnp.float32, -bound, bound); idx += 1
        params[f"w_hh_{l}"] = jax.random.uniform(
            keys[idx], (4 * hidden_size, hidden_size), jnp.float32, -bound, bound); idx += 1
        params[f"b_ih_{l}"] = jax.random.uniform(
            keys[idx], (4 * hidden_size,), jnp.float32, -bound, bound); idx += 1
        params[f"b_hh_{l}"] = jax.random.uniform(
            keys[idx], (4 * hidden_size,), jnp.float32, -bound, bound); idx += 1
    params["w_fc"] = jax.random.uniform(
        keys[idx], (output_size, hidden_size), jnp.float32, -bound, bound); idx += 1
    params["b_fc"] = jax.random.uniform(
        keys[idx], (output_size,), jnp.float32, -bound, bound)
    return params


def reference_forward(x, params):
    """Pure-JAX reference of the same math (eval-mode nn.LSTM + nn.Linear)."""
    B, T, _ = x.shape
    H = params["hidden_size"]
    hi = lax.Precision.HIGHEST
    seq = x
    for l in range(params["num_layers"]):
        w_ih = params[f"w_ih_{l}"]
        w_hh = params[f"w_hh_{l}"]
        b = params[f"b_ih_{l}"] + params[f"b_hh_{l}"]

        def step(carry, x_t, w_ih=w_ih, w_hh=w_hh, b=b):
            h, c = carry
            gates = (jnp.dot(x_t, w_ih.T, precision=hi)
                     + jnp.dot(h, w_hh.T, precision=hi) + b)
            i_g = jax.nn.sigmoid(gates[:, 0 * H:1 * H])
            f_g = jax.nn.sigmoid(gates[:, 1 * H:2 * H])
            g_g = jnp.tanh(gates[:, 2 * H:3 * H])
            o_g = jax.nn.sigmoid(gates[:, 3 * H:4 * H])
            c_new = f_g * c + i_g * g_g
            h_new = o_g * jnp.tanh(c_new)
            return (h_new, c_new), h_new

        h0 = jnp.zeros((B, H), jnp.float32)
        c0 = jnp.zeros((B, H), jnp.float32)
        _, hs = lax.scan(step, (h0, c0), jnp.transpose(seq, (1, 0, 2)))
        seq = jnp.transpose(hs, (1, 0, 2))
    return jnp.dot(seq[:, -1, :], params["w_fc"].T, precision=hi) + params["b_fc"]


if __name__ == "__main__":
    B, T = 2, 8
    input_size, hidden_size, num_layers, output_size = 4, 32, 2, 1

    key = jax.random.PRNGKey(0)
    kx, kp = jax.random.split(key)
    x = jax.random.normal(kx, (B, T, input_size), jnp.float32)
    params = init_params(kp, input_size, hidden_size, num_layers, output_size)

    out = jax.block_until_ready(stock_lstm_forward(x, params))
    ref = reference_forward(x, params)

    assert out.shape == (B, output_size), out.shape
    assert jnp.allclose(out, ref, atol=2e-3, rtol=2e-3), (out, ref)

    print("KERNEL_OK")
</pallas_src>

<mosaic_0001>
module attributes {stable_mosaic.version = 11 : i64} {
  func.func @_proj_kernel(%arg0: i32, %arg1: memref<64x4xf32, #tpu.memory_space<vmem>>, %arg2: memref<4x512xf32, #tpu.memory_space<vmem>>, %arg3: memref<1x512xf32, #tpu.memory_space<vmem>>, %arg4: memref<64x512xf32, #tpu.memory_space<vmem>>) attributes {dimension_semantics = [#tpu.dimension_semantics<parallel>], iteration_bounds = array<i64: 1>, scalar_prefetch = 0 : i64, scratch_operands = 0 : i64, tpu.core_type = #tpu.core_type<tc>, window_params = [{transform_indices = @transform_0, window_bounds = array<i64: 64, 4>}, {pipeline_mode = #tpu.pipeline_mode<synchronous>, transform_indices = @transform_1, window_bounds = array<i64: 4, 512>}, {pipeline_mode = #tpu.pipeline_mode<synchronous>, transform_indices = @transform_2, window_bounds = array<i64: 1, 512>}, {transform_indices = @transform_3, window_bounds = array<i64: 64, 512>}]} {
    %c0 = arith.constant 0 : index
    %c0_0 = arith.constant 0 : index
    %0 = vector.load %arg1[%c0, %c0_0] : memref<64x4xf32, #tpu.memory_space<vmem>>, vector<64x4xf32>
    %c0_1 = arith.constant 0 : index
    %c0_2 = arith.constant 0 : index
    %1 = vector.load %arg2[%c0_1, %c0_2] : memref<4x512xf32, #tpu.memory_space<vmem>>, vector<4x512xf32>
    %cst = arith.constant dense<0.000000e+00> : vector<64x512xf32>
    %2 = tpu.matmul %0, %1, %cst {dimension_numbers = #tpu.dot_dimension_numbers<[1], [0], [0], [1], [0, 0, 1, 1], [], []>} : vector<64x4xf32>, vector<4x512xf32>, vector<64x512xf32> -> vector<64x512xf32>
    %c0_3 = arith.constant 0 : index
    %c0_4 = arith.constant 0 : index
    %3 = vector.load %arg3[%c0_3, %c0_4] : memref<1x512xf32, #tpu.memory_space<vmem>>, vector<1x512xf32>
    %4 = vector.broadcast %3 : vector<1x512xf32> to vector<64x512xf32>
    %5 = arith.addf %2, %4 : vector<64x512xf32>
    %c0_5 = arith.constant 0 : index
    %c0_6 = arith.constant 0 : index
    %6 = vector.load %arg4[%c0_5, %c0_6] : memref<64x512xf32, #tpu.memory_space<vmem>>, vector<64x512xf32>
    tpu.vector_store %arg4[%c0_5, %c0_6], %5 {strides = array<i32>} : memref<64x512xf32, #tpu.memory_space<vmem>>, vector<64x512xf32>,
    return
  }
  func.func @transform_0(%arg0: i32) -> (i32, i32) {
    %c0_i32 = arith.constant 0 : i32
    %c0_i32_0 = arith.constant 0 : i32
    return %arg0, %c0_i32 : i32, i32
  }
  func.func @transform_1(%arg0: i32) -> (i32, i32) {
    %c0_i32 = arith.constant 0 : i32
    %c0_i32_0 = arith.constant 0 : i32
    %c0_i32_1 = arith.constant 0 : i32
    return %c0_i32, %c0_i32_0 : i32, i32
  }
  func.func @transform_2(%arg0: i32) -> (i32, i32) {
    %c0_i32 = arith.constant 0 : i32
    %c0_i32_0 = arith.constant 0 : i32
    %c0_i32_1 = arith.constant 0 : i32
    return %c0_i32, %c0_i32_0 : i32, i32
  }
  func.func @transform_3(%arg0: i32) -> (i32, i32) {
    %c0_i32 = arith.constant 0 : i32
    %c0_i32_0 = arith.constant 0 : i32
    return %arg0, %c0_i32 : i32, i32
  }
}

</mosaic_0001>

<llo_original>
// kernel: tpu_custom_call.1
$region0: #{tpu_custom_call.1}
  #allocation0 [shape = 'u32[]', space=smem, size = 0x4, offset = 0x4, fixed_abs, tag = 'smem constant byte address 0x4 - core index']
  #allocation1 [shape = 'u32[144,128]{1,0:T(1,128)}', space=vmem, size = 0x12000, scoped, tag = 'internal scratch']
  %s0 = inlined_call_operand.hbm [shape: f32[64,4], index: 0, kind: input, shape index: {}]
  %s1 = inlined_call_operand.hbm [shape: f32[4,512], index: 1, kind: input, shape index: {}]
  %s2 = inlined_call_operand.hbm [shape: f32[1,512], index: 2, kind: input, shape index: {}]
  %s3 = inlined_call_operand.hbm [shape: f32[64,512], index: 3, kind: output, shape index: {}]
  %s4 = sld [smem:[#allocation0]]
  $region34: #{tpu_custom_call.1} parent=0
    _
  %s6 = ssub.s32 1, %s4
  %s7 = scalar_select 0, %s6, %s4
  $region1: #{tpu_custom_call.1} parent=0
    #allocation2 [shape = 'u8[32768]{0}', space=vmem, size = 0x8000, scoped, tag = 'input window, operand 0, single buffered']
    #allocation3 [shape = 's32[1]{0}', space=sflag, size = 0x4, scoped, tag = 'scoped memory for tpu_custom_call.1']
    #allocation4 [shape = 's32[1]{0}', space=sflag, size = 0x4, scoped, tag = 'scoped memory for tpu_custom_call.1']
    #allocation5 [shape = 'u8[8192]{0}', space=vmem, size = 0x2000, scoped, tag = 'input window, operand 1, single buffered']
    #allocation6 [shape = 's32[1]{0}', space=sflag, size = 0x4, scoped, tag = 'scoped memory for tpu_custom_call.1']
    #allocation7 [shape = 'u8[2048]{0}', space=vmem, size = 0x800, scoped, tag = 'input window, operand 2, single buffered']
    #allocation8 [shape = 'u8[131072]{0}', space=vmem, size = 0x20000, scoped, tag = 'output window, operand 0, single buffered']
    %8 = vsyncpa [#allocation3], 0
    %9 = vsyncpa [#allocation6], 0
    %10 = vsyncpa [#allocation4], 0
    // Predicated region
    $region2: #{tpu_custom_call.1} parent=1 // pred_check
      _
    $region3: #{tpu_custom_call.1} parent=1 // pred_check_branch
      %12 = sbr.rel (0) target = $region5
    $region4: #{tpu_custom_call.1} parent=1 // pred_region
      %s14 = ssub.s32 1024, 1024
      %15 = vsyncadd [#allocation3], %s14
      %s16 = sshll.u32 [#allocation2], 4
      %s17 = int_to_ptr.vmem [resolvable:$true] %s16
      %22 = dma.hbm_to_vmem [thread:$0]  %s0, 1024, %s17, [#allocation3], 128, 128, 8
    $region5: #{tpu_custom_call.1} parent=1 // pred_fallthru
      _
    // Predicated region
    $region6: #{tpu_custom_call.1} parent=1 // pred_check
      _
    $region7: #{tpu_custom_call.1} parent=1 // pred_check_branch
      %24 = sbr.rel (0) target = $region9
    $region8: #{tpu_custom_call.1} parent=1 // pred_region
      %s26 = ssub.s32 256, 256
      %27 = vsyncadd [#allocation6], %s26
      %s29 = sshll.u32 [#allocation5], 4
      %s30 = int_to_ptr.vmem [resolvable:$true] %s29
      %32 = dma.hbm_to_vmem [thread:$0]  %s1, 256, %s30, [#allocation6]
    $region9: #{tpu_custom_call.1} parent=1 // pred_fallthru
      _
    // Predicated region
    $region10: #{tpu_custom_call.1} parent=1 // pred_check
      _
    $region11: #{tpu_custom_call.1} parent=1 // pred_check_branch
      %34 = sbr.rel (0) target = $region13
    $region12: #{tpu_custom_call.1} parent=1 // pred_region
      %s36 = ssub.s32 64, 64
      %37 = vsyncadd [#allocation6], %s36
      %s39 = sshll.u32 [#allocation7], 4
      %s40 = int_to_ptr.vmem [resolvable:$true] %s39
      %42 = dma.hbm_to_vmem [thread:$0]  %s2, 64, %s40, [#allocation6]
    $region13: #{tpu_custom_call.1} parent=1 // pred_fallthru
      _
    // Predicated region
    $region14: #{tpu_custom_call.1} parent=1 // pred_check
      _
    $region15: #{tpu_custom_call.1} parent=1 // pred_check_branch
      %44 = sbr.rel (0) target = $region17
    $region16: #{tpu_custom_call.1} parent=1 // pred_region
      %45 = dma.done [#allocation3], 1024
    $region17: #{tpu_custom_call.1} parent=1 // pred_fallthru
      _
    // Predicated region
    $region18: #{tpu_custom_call.1} parent=1 // pred_check
      _
    $region19: #{tpu_custom_call.1} parent=1 // pred_check_branch
      %47 = sbr.rel (0) target = $region21
    $region20: #{tpu_custom_call.1} parent=1 // pred_region
      %48 = dma.done [#allocation6], 256
    $region21: #{tpu_custom_call.1} parent=1 // pred_fallthru
      _
    // Predicated region
    $region22: #{tpu_custom_call.1} parent=1 // pred_check
      _
    $region23: #{tpu_custom_call.1} parent=1 // pred_check_branch
      %50 = sbr.rel (0) target = $region25
    $region24: #{tpu_custom_call.1} parent=1 // pred_region
      %51 = dma.done [#allocation6], 64
    $region25: #{tpu_custom_call.1} parent=1 // pred_fallthru
      _
    %v52 = vld [vmem:[#allocation2] sm:$0xff]
    %v53 = vld [vmem:[#allocation2 + $0x8] sm:$0xff]
    %v54 = vld [vmem:[#allocation2 + $0x10] sm:$0xff]
    %v55 = vld [vmem:[#allocation2 + $0x18] sm:$0xff]
    %v56 = vld [vmem:[#allocation2 + $0x20] sm:$0xff]
    %v57 = vld [vmem:[#allocation2 + $0x28] sm:$0xff]
    %v58 = vld [vmem:[#allocation2 + $0x30] sm:$0xff]
    %v59 = vld [vmem:[#allocation2 + $0x38] sm:$0xff]
    %v60 = vld [vmem:[#allocation5] sm:$0xff]
    %v61 = vld [vmem:[#allocation5 + $0x8] sm:$0xff]
    %v62 = vld [vmem:[#allocation7] sm:$0xf]
    %v64 = vlaneseq
    %v65 = vshrl.u32 %v64, 7
    %v66 = vsub.s32 0, %v65
    %v67 = vrot.slane %v62, %v66
    %v68 = vlaneseq
    %v69 = vshrl.u32 %v68, 7
    %v70 = vsub.s32 1, %v69
    %v71 = vrot.slane %v62, %v70
    %v72 = vlaneseq
    %v73 = vshrl.u32 %v72, 7
    %v74 = vsub.s32 2, %v73
    %v75 = vrot.slane %v62, %v74
    %v76 = vlaneseq
    %v77 = vshrl.u32 %v76, 7
    %v78 = vsub.s32 3, %v77
    %v79 = vrot.slane %v62, %v78
    %v86 = vcombine.high %v60, %v60
    %v87 = vcombine.high %v61, %v61
    %vm88 = vcmask 31744
    %v90 = vsel %vm88, %v52, 0
    %v93 = vsel %vm88, %v53, 0
    %v96 = vsel %vm88, %v54, 0
    %v99 = vsel %vm88, %v55, 0
    %v102 = vsel %vm88, %v56, 0
    %v105 = vsel %vm88, %v57, 0
    %v108 = vsel %vm88, %v58, 0
    %v111 = vsel %vm88, %v59, 0
    %vm113 = vcmask 1043456
    %v114 = vsel %vm113, %v60, 0
    %v116 = vsel %vm113, %v86, 0
    %v118 = vsel %vm113, %v61, 0
    %v120 = vsel %vm113, %v87, 0
    %122 = vmatprep.subr.mxu0 %v116
    %123 = vmatpush1.msra.mxu0 %v114
    %124 = vmatprep.subr.mxu0 0.0
    %125 = vmatpush1.msra.mxu0 0.0
    %126 = vmatprep.subr.mxu0 0.0
    %127 = vmatpush1.msra.mxu0 0.0
    %128 = vmatprep.subr.mxu0 0.0
    %129 = vmatpush1.msra.mxu0 0.0
    %130 = vmatprep.subr.mxu0 0.0
    %131 = vmatpush1.msra.mxu0 0.0
    %132 = vmatprep.subr.mxu0 0.0
    %133 = vmatpush1.msra.mxu0 0.0
    %134 = vmatprep.subr.mxu0 0.0
    %135 = vmatpush1.msra.mxu0 0.0
    %136 = vmatprep.subr.mxu0 0.0
    %137 = vmatpush1.msra.mxu0 0.0
    %138 = vmatprep.subr.mxu0 0.0
    %139 = vmatpush1.msra.mxu0 0.0
    %140 = vmatprep.subr.mxu0 0.0
    %141 = vmatpush1.msra.mxu0 0.0
    %142 = vmatprep.subr.mxu0 0.0
    %143 = vmatpush1.msra.mxu0 0.0
    %144 = vmatprep.subr.mxu0 0.0
    %145 = vmatpush1.msra.mxu0 0.0
    %146 = vmatprep.subr.mxu0 0.0
    %147 = vmatpush1.msra.mxu0 0.0
    %148 = vmatprep.subr.mxu0 0.0
    %149 = vmatpush1.msra.mxu0 0.0
    %150 = vmatprep.subr.mxu0 0.0
    %151 = vmatpush1.msra.mxu0 0.0
    %152 = vmatprep.subr.mxu0 0.0
    %153 = vmatpush1.msra.mxu0 0.0
    %154 = vmatprep.subr.mxu0 0.0
    %155 = vmatpush1.msra.mxu0 0.0
    %156 = vmatprep.subr.mxu0 0.0
    %157 = vmatpush1.msra.mxu0 0.0
    %158 = vmatprep.subr.mxu0 0.0
    %159 = vmatpush1.msra.mxu0 0.0
    %160 = vmatprep.subr.mxu0 0.0
    %161 = vmatpush1.msra.mxu0 0.0
    %162 = vmatprep.subr.mxu0 0.0
    %163 = vmatpush1.msra.mxu0 0.0
    %164 = vmatprep.subr.mxu0 0.0
    %165 = vmatpush1.msra.mxu0 0.0
    %166 = vmatprep.subr.mxu0 0.0
    %167 = vmatpush1.msra.mxu0 0.0
    %168 = vmatprep.subr.mxu0 0.0
    %169 = vmatpush1.msra.mxu0 0.0
    %170 = vmatprep.subr.mxu0 0.0
    %171 = vmatpush1.msra.mxu0 0.0
    %172 = vmatprep.subr.mxu0 0.0
    %173 = vmatpush1.msra.mxu0 0.0
    %174 = vmatprep.subr.mxu0 0.0
    %175 = vmatpush1.msra.mxu0 0.0
    %176 = vmatprep.subr.mxu0 0.0
    %177 = vmatpush1.msra.mxu0 0.0
    %178 = vmatprep.subr.mxu0 0.0
    %179 = vmatpush1.msra.mxu0 0.0
    %180 = vmatprep.subr.mxu0 0.0
    %181 = vmatpush1.msra.mxu0 0.0
    %182 = vmatprep.subr.mxu0 0.0
    %183 = vmatpush1.msra.mxu0 0.0
    %184 = vmatprep.subr.mxu0 0.0
    %185 = vmatpush1.msra.mxu0 0.0
    %186 = vmatprep.mubr.f32.mxu0 0.0
    %187 = vmatmul.mubr.f32.gmra.mrb[0].mxu0 %v90
    %v188 = vpop.f32.mrb[0].mxu0
    %v189 = vadd.f32 %v67, %v188
    %v190 = vpop.f32.mrb[0].mxu0
    %v191 = vadd.f32 %v71, %v190
    %192 = vmatprep.mubr.f32.mxu0 0.0
    %193 = vmatmul.mubr.f32.gmra.mrb[0].mxu0 %v93
    %v194 = vpop.f32.mrb[0].mxu0
    %v195 = vadd.f32 %v67, %v194
    %v196 = vpop.f32.mrb[0].mxu0
    %v197 = vadd.f32 %v71, %v196
    %198 = vmatprep.mubr.f32.mxu0 0.0
    %199 = vmatmul.mubr.f32.gmra.mrb[0].mxu0 %v96
    %v200 = vpop.f32.mrb[0].mxu0
    %v201 = vadd.f32 %v67, %v200
    %v202 = vpop.f32.mrb[0].mxu0
    %v203 = vadd.f32 %v71, %v202
    %204 = vmatprep.mubr.f32.mxu0 0.0
    %205 = vmatmul.mubr.f32.gmra.mrb[0].mxu0 %v99
    %v206 = vpop.f32.mrb[0].mxu0
    %v207 = vadd.f32 %v67, %v206
    %v208 = vpop.f32.mrb[0].mxu0
    %v209 = vadd.f32 %v71, %v208
    %210 = vmatprep.mubr.f32.mxu0 0.0
    %211 = vmatmul.mubr.f32.gmra.mrb[0].mxu0 %v102
    %v212 = vpop.f32.mrb[0].mxu0
    %v213 = vadd.f32 %v67, %v212
    %v214 = vpop.f32.mrb[0].mxu0
    %v215 = vadd.f32 %v71, %v214
    %216 = vmatprep.mubr.f32.mxu0 0.0
    %217 = vmatmul.mubr.f32.gmra.mrb[0].mxu0 %v105
    %v218 = vpop.f32.mrb[0].mxu0
    %v219 = vadd.f32 %v67, %v218
    %v220 = vpop.f32.mrb[0].mxu0
    %v221 = vadd.f32 %v71, %v220
    %222 = vmatprep.mubr.f32.mxu0 0.0
    %223 = vmatmul.mubr.f32.gmra.mrb[0].mxu0 %v108
    %v224 = vpop.f32.mrb[0].mxu0
    %v225 = vadd.f32 %v67, %v224
    %v226 = vpop.f32.mrb[0].mxu0
    %v227 = vadd.f32 %v71, %v226
    %228 = vmatprep.mubr.f32.mxu0 0.0
    %229 = vmatmul.mubr.f32.gmra.mrb[0].mxu0 %v111
    %v230 = vpop.f32.mrb[0].mxu0
    %v231 = vadd.f32 %v67, %v230
    %v232 = vpop.f32.mrb[0].mxu0
    %v233 = vadd.f32 %v71, %v232
    %234 = vdwg.mxu0
    %235 = vmatprep.subr.mxu0 %v120
    %236 = vmatpush1.msra.mxu0 %v118
    %237 = vmatprep.subr.mxu0 0.0
    %238 = vmatpush1.msra.mxu0 0.0
    %239 = vmatprep.subr.mxu0 0.0
    %240 = vmatpush1.msra.mxu0 0.0
    %241 = vmatprep.subr.mxu0 0.0
    %242 = vmatpush1.msra.mxu0 0.0
    %243 = vmatprep.subr.mxu0 0.0
    %244 = vmatpush1.msra.mxu0 0.0
    %245 = vmatprep.subr.mxu0 0.0
    %246 = vmatpush1.msra.mxu0 0.0
    %247 = vmatprep.subr.mxu0 0.0
    %248 = vmatpush1.msra.mxu0 0.0
    %249 = vmatprep.subr.mxu0 0.0
    %250 = vmatpush1.msra.mxu0 0.0
    %251 = vmatprep.subr.mxu0 0.0
    %252 = vmatpush1.msra.mxu0 0.0
    %253 = vmatprep.subr.mxu0 0.0
    %254 = vmatpush1.msra.mxu0 0.0
    %255 = vmatprep.subr.mxu0 0.0
    %256 = vmatpush1.msra.mxu0 0.0
    %257 = vmatprep.subr.mxu0 0.0
    %258 = vmatpush1.msra.mxu0 0.0
    %259 = vmatprep.subr.mxu0 0.0
    %260 = vmatpush1.msra.mxu0 0.0
    %261 = vmatprep.subr.mxu0 0.0
    %262 = vmatpush1.msra.mxu0 0.0
    %263 = vmatprep.subr.mxu0 0.0
    %264 = vmatpush1.msra.mxu0 0.0
    %265 = vmatprep.subr.mxu0 0.0
    %266 = vmatpush1.msra.mxu0 0.0
    %267 = vmatprep.subr.mxu0 0.0
    %268 = vmatpush1.msra.mxu0 0.0
    %269 = vmatprep.subr.mxu0 0.0
    %270 = vmatpush1.msra.mxu0 0.0
    %271 = vmatprep.subr.mxu0 0.0
    %272 = vmatpush1.msra.mxu0 0.0
    %273 = vmatprep.subr.mxu0 0.0
    %274 = vmatpush1.msra.mxu0 0.0
    %275 = vmatprep.subr.mxu0 0.0
    %276 = vmatpush1.msra.mxu0 0.0
    %277 = vmatprep.subr.mxu0 0.0
    %278 = vmatpush1.msra.mxu0 0.0
    %279 = vmatprep.subr.mxu0 0.0
    %280 = vmatpush1.msra.mxu0 0.0
    %281 = vmatprep.subr.mxu0 0.0
    %282 = vmatpush1.msra.mxu0 0.0
    %283 = vmatprep.subr.mxu0 0.0
    %284 = vmatpush1.msra.mxu0 0.0
    %285 = vmatprep.subr.mxu0 0.0
    %286 = vmatpush1.msra.mxu0 0.0
    %287 = vmatprep.subr.mxu0 0.0
    %288 = vmatpush1.msra.mxu0 0.0
    %289 = vmatprep.subr.mxu0 0.0
    %290 = vmatpush1.msra.mxu0 0.0
    %291 = vmatprep.subr.mxu0 0.0
    %292 = vmatpush1.msra.mxu0 0.0
    %293 = vmatprep.subr.mxu0 0.0
    %294 = vmatpush1.msra.mxu0 0.0
    %295 = vmatprep.subr.mxu0 0.0
    %296 = vmatpush1.msra.mxu0 0.0
    %297 = vmatprep.subr.mxu0 0.0
    %298 = vmatpush1.msra.mxu0 0.0
    %299 = vmatprep.mubr.f32.mxu0 0.0
    %300 = vmatmul.mubr.f32.gmra.mrb[0].mxu0 %v90
    %v301 = vpop.f32.mrb[0].mxu0
    %v302 = vadd.f32 %v75, %v301
    %v303 = vpop.f32.mrb[0].mxu0
    %v304 = vadd.f32 %v79, %v303
    %305 = vmatprep.mubr.f32.mxu0 0.0
    %306 = vmatmul.mubr.f32.gmra.mrb[0].mxu0 %v93
    %v307 = vpop.f32.mrb[0].mxu0
    %v308 = vadd.f32 %v75, %v307
    %v309 = vpop.f32.mrb[0].mxu0
    %v310 = vadd.f32 %v79, %v309
    %311 = vmatprep.mubr.f32.mxu0 0.0
    %312 = vmatmul.mubr.f32.gmra.mrb[0].mxu0 %v96
    %v313 = vpop.f32.mrb[0].mxu0
    %v314 = vadd.f32 %v75, %v313
    %v315 = vpop.f32.mrb[0].mxu0
    %v316 = vadd.f32 %v79, %v315
    %317 = vmatprep.mubr.f32.mxu0 0.0
    %318 = vmatmul.mubr.f32.gmra.mrb[0].mxu0 %v99
    %v319 = vpop.f32.mrb[0].mxu0
    %v320 = vadd.f32 %v75, %v319
    %v321 = vpop.f32.mrb[0].mxu0
    %v322 = vadd.f32 %v79, %v321
    %323 = vmatprep.mubr.f32.mxu0 0.0
    %324 = vmatmul.mubr.f32.gmra.mrb[0].mxu0 %v102
    %v325 = vpop.f32.mrb[0].mxu0
    %v326 = vadd.f32 %v75, %v325
    %v327 = vpop.f32.mrb[0].mxu0
    %v328 = vadd.f32 %v79, %v327
    %329 = vmatprep.mubr.f32.mxu0 0.0
    %330 = vmatmul.mubr.f32.gmra.mrb[0].mxu0 %v105
    %v331 = vpop.f32.mrb[0].mxu0
    %v332 = vadd.f32 %v75, %v331
    %v333 = vpop.f32.mrb[0].mxu0
    %v334 = vadd.f32 %v79, %v333
    %335 = vmatprep.mubr.f32.mxu0 0.0
    %336 = vmatmul.mubr.f32.gmra.mrb[0].mxu0 %v108
    %v337 = vpop.f32.mrb[0].mxu0
    %v338 = vadd.f32 %v75, %v337
    %v339 = vpop.f32.mrb[0].mxu0
    %v340 = vadd.f32 %v79, %v339
    %341 = vmatprep.mubr.f32.mxu0 0.0
    %342 = vmatmul.mubr.f32.gmra.mrb[0].mxu0 %v111
    %v343 = vpop.f32.mrb[0].mxu0
    %v344 = vadd.f32 %v75, %v343
    %v345 = vpop.f32.mrb[0].mxu0
    %v346 = vadd.f32 %v79, %v345
    %347 = vdwg.mxu0
    %348 = vst [vmem:[#allocation8] sm:$0xff] %v189
    %349 = vst [vmem:[#allocation8 + $0x8] sm:$0xff] %v191
    %350 = vst [vmem:[#allocation8 + $0x10] sm:$0xff] %v302
    %351 = vst [vmem:[#allocation8 + $0x18] sm:$0xff] %v304
    %352 = vst [vmem:[#allocation8 + $0x20] sm:$0xff] %v195
    %353 = vst [vmem:[#allocation8 + $0x28] sm:$0xff] %v197
    %354 = vst [vmem:[#allocation8 + $0x30] sm:$0xff] %v308
    %355 = vst [vmem:[#allocation8 + $0x38] sm:$0xff] %v310
    %356 = vst [vmem:[#allocation8 + $0x40] sm:$0xff] %v201
    %357 = vst [vmem:[#allocation8 + $0x48] sm:$0xff] %v203
    %358 = vst [vmem:[#allocation8 + $0x50] sm:$0xff] %v314
    %359 = vst [vmem:[#allocation8 + $0x58] sm:$0xff] %v316
    %360 = vst [vmem:[#allocation8 + $0x60] sm:$0xff] %v207
    %361 = vst [vmem:[#allocation8 + $0x68] sm:$0xff] %v209
    %362 = vst [vmem:[#allocation8 + $0x70] sm:$0xff] %v320
    %363 = vst [vmem:[#allocation8 + $0x78] sm:$0xff] %v322
    %364 = vst [vmem:[#allocation8 + $0x80] sm:$0xff] %v213
    %365 = vst [vmem:[#allocation8 + $0x88] sm:$0xff] %v215
    %366 = vst [vmem:[#allocation8 + $0x90] sm:$0xff] %v326
    %367 = vst [vmem:[#allocation8 + $0x98] sm:$0xff] %v328
    %368 = vst [vmem:[#allocation8 + $0xa0] sm:$0xff] %v219
    %369 = vst [vmem:[#allocation8 + $0xa8] sm:$0xff] %v221
    %370 = vst [vmem:[#allocation8 + $0xb0] sm:$0xff] %v332
    %371 = vst [vmem:[#allocation8 + $0xb8] sm:$0xff] %v334
    %372 = vst [vmem:[#allocation8 + $0xc0] sm:$0xff] %v225
    %373 = vst [vmem:[#allocation8 + $0xc8] sm:$0xff] %v227
    %374 = vst [vmem:[#allocation8 + $0xd0] sm:$0xff] %v338
    %375 = vst [vmem:[#allocation8 + $0xd8] sm:$0xff] %v340
    %376 = vst [vmem:[#allocation8 + $0xe0] sm:$0xff] %v231
    %377 = vst [vmem:[#allocation8 + $0xe8] sm:$0xff] %v233
    %378 = vst [vmem:[#allocation8 + $0xf0] sm:$0xff] %v344
    %379 = vst [vmem:[#allocation8 + $0xf8] sm:$0xff] %v346
    // Predicated region
    $region26: #{tpu_custom_call.1} parent=1 // pred_check
      _
    $region27: #{tpu_custom_call.1} parent=1 // pred_check_branch
      %381 = sbr.rel (0) target = $region29
    $region28: #{tpu_custom_call.1} parent=1 // pred_region
      %s383 = ssub.s32 4096, 4096
      %384 = vsyncadd [#allocation4], %s383
      %s385 = sshll.u32 [#allocation8], 4
      %s386 = int_to_ptr.vmem [resolvable:$true] %s385
      %391 = dma.vmem_to_hbm [thread:$0]  %s386, 4096, %s3, [#allocation4], 512, 512, 32
    $region29: #{tpu_custom_call.1} parent=1 // pred_fallthru
      _
    // Predicated region
    $region30: #{tpu_custom_call.1} parent=1 // pred_check
      _
    $region31: #{tpu_custom_call.1} parent=1 // pred_check_branch
      %393 = sbr.rel (0) target = $region33
    $region32: #{tpu_custom_call.1} parent=1 // pred_region
      %394 = dma.done [#allocation4], 4096
    $region33: #{tpu_custom_call.1} parent=1 // pred_fallthru
      _
    %395 = vsyncpa [#allocation3], 1
    %396 = vsyncpa [#allocation6], 1
    %397 = vsyncpa [#allocation4], 1

</llo_original>
